<compile_context>
chip_gen: v6e
topology: v6e:2x2x1
jax: 0.10.0
libtpu: 0.0.40
codegen_flags: <defaults>
</compile_context>

<pallas_src>
import functools
import math

import jax
import jax.numpy as jnp
from jax import lax
from jax.experimental import pallas as pl
from jax.experimental.pallas import tpu as pltpu


def sinusoidal_position_encoding(seq_len: int, d_model: int) -> jax.Array:
    """Same table as the PyTorch module's `pe` buffer (d_model must be even)."""
    position = jnp.arange(seq_len, dtype=jnp.float32)[:, None]              # (S, 1)
    div_term = jnp.exp(
        jnp.arange(0, d_model, 2, dtype=jnp.float32)
        * (-math.log(10000.0) / d_model))                                   # (H/2,)
    angles = position * div_term                                            # (S, H/2)
    # Interleave so that pe[:, 0::2] = sin, pe[:, 1::2] = cos.
    pe = jnp.stack([jnp.sin(angles), jnp.cos(angles)], axis=-1)
    return pe.reshape(seq_len, d_model)


def _uniform_u32(idx_i32, seed_u32):
    """Counter-based per-element uniform uint32 bits (murmur3 fmix32)."""
    x = idx_i32.astype(jnp.uint32) + seed_u32 * jnp.uint32(0x9E3779B9)
    x = x ^ (x >> jnp.uint32(16))
    x = x * jnp.uint32(0x85EBCA6B)
    x = x ^ (x >> jnp.uint32(13))
    x = x * jnp.uint32(0xC2B2AE35)
    x = x ^ (x >> jnp.uint32(16))
    return x


def _pe_dropout_kernel(seed_ref, x_ref, pe_ref, o_ref, *,
                       tile_r, hidden, drop_threshold, inv_keep):
    """y = dropout(x + pe) for one row tile.

    seed_ref : SMEM (1,) int32            dropout seed
    x_ref    : VMEM (tile_r, hidden) f32  input rows (flattened batch*seq)
    pe_ref   : VMEM (tile_r, hidden) f32  positional-encoding rows for this tile
    o_ref    : VMEM (tile_r, hidden) f32  output rows
    """
    y = x_ref[...] + pe_ref[...]

    if drop_threshold > 0:                  # static: dropout active (p > 0, training)
        # Global element id -> unique random bits per element, independent of the
        # tiling.  Assumes B*S*H < 2^31 (wraps deterministically beyond that).
        r0 = pl.program_id(0) * tile_r
        r_iota = lax.broadcasted_iota(jnp.int32, y.shape, 0)   # sublane iota
        h_iota = lax.broadcasted_iota(jnp.int32, y.shape, 1)   # lane iota
        gid = (r0 + r_iota) * hidden + h_iota
        bits = _uniform_u32(gid, seed_ref[0].astype(jnp.uint32))
        keep = bits >= jnp.uint32(drop_threshold)              # P(keep) = 1 - p
        y = jnp.where(keep, y * inv_keep, 0.0)                 # inverted-scale dropout

    o_ref[...] = y


def _pick_row_tile(n_rows: int, seq_len: int, hidden: int, itemsize: int,
                   budget_bytes: int = 2 << 20) -> int:
    """Largest legal row tile under a per-block VMEM budget.

    Constraints:
      * tile_r divides n_rows (exact grid coverage),
      * tile_r % 8 == 0 or tile_r == n_rows   ((8,128) block rule),
      * tile_r | seq_len  or  seq_len | tile_r (so pe can be mapped per tile).
    """
    max_rows = max(1, budget_bytes // max(1, hidden * itemsize))
    for t in range(min(n_rows, max_rows), 0, -1):
        if n_rows % t != 0:
            continue
        if not (t % 8 == 0 or t == n_rows):
            continue
        if not (seq_len % t == 0 or t % seq_len == 0):
            continue
        return t
    return n_rows          # fallback: whole array as one block (always legal)


def position_encoder_forward(x, pe, *, dropout_p: float, seed: int,
                             training: bool = True):
    """x: (B, S, H) f32, pe: (>=S, H) f32 -> (B, S, H) f32."""
    B, S, H = x.shape
    pe = pe[:S].astype(x.dtype)

    p = float(dropout_p) if training else 0.0
    assert 0.0 <= p < 1.0
    drop_threshold = min(int(round(p * 2**32)), 2**32 - 1) if p > 0.0 else 0
    inv_keep = 1.0 / (1.0 - p)

    n_rows = B * S
    itemsize = jnp.dtype(x.dtype).itemsize
    tile_r = _pick_row_tile(n_rows, S, H, itemsize)
    n_row_tiles = n_rows // tile_r

    if tile_r % S == 0:
        # Row tile spans whole pe period(s): pre-tile pe to exactly one block.
        # Its block index is constant, so the pipeline DMAs it only once.
        pe_op = jnp.tile(pe, (tile_r // S, 1))                 # (tile_r, H)
        pe_index = lambda i: (0, 0)
    else:
        # Row tile divides S: pe block cycles with period S // tile_r.
        n_pe_tiles = S // tile_r
        pe_op = pe                                             # (S, H)
        pe_index = lambda i: (i % n_pe_tiles, 0)

    kernel = functools.partial(
        _pe_dropout_kernel,
        tile_r=tile_r, hidden=H,
        drop_threshold=drop_threshold, inv_keep=inv_keep)

    seed_arr = jnp.asarray([seed], dtype=jnp.int32)
    x2 = x.reshape(n_rows, H)                                  # free reshape

    out2 = pl.pallas_call(
        kernel,
        out_shape=jax.ShapeDtypeStruct((n_rows, H), x.dtype),
        grid=(n_row_tiles,),
        in_specs=[
            pl.BlockSpec(memory_space=pltpu.MemorySpace.SMEM),   # seed scalar
            pl.BlockSpec((tile_r, H), lambda i: (i, 0)),         # x row tile
            pl.BlockSpec((tile_r, H), pe_index),                 # pe tile
        ],
        out_specs=pl.BlockSpec((tile_r, H), lambda i: (i, 0)),
        compiler_params=pltpu.CompilerParams(
            dimension_semantics=("parallel",)),
    )(seed_arr, x2, pe_op)

    return out2.reshape(B, S, H)


if __name__ == "__main__":
    B, S, H = 2, 8, 128          # small demo; H is a lane-dense multiple of 128
    DROPOUT_P = 0.2

    key = jax.random.PRNGKey(0)
    x = jax.random.normal(key, (B, S, H), dtype=jnp.float32)
    pe = sinusoidal_position_encoding(S, H)

    out = position_encoder_forward(x, pe, dropout_p=DROPOUT_P, seed=0)
    jax.block_until_ready(out)

    assert out.shape == (B, S, H)
    assert out.dtype == jnp.float32

    # Sanity check against the reference forward: every kept element must equal
    # (x + pe) / (1 - p); dropped elements are exactly zero.
    import numpy as np
    ref = np.asarray(x) + np.asarray(pe)[None, :, :]
    out_np = np.asarray(out)
    kept = out_np != 0.0
    np.testing.assert_allclose(out_np[kept], (ref / (1.0 - DROPOUT_P))[kept],
                               rtol=1e-5, atol=1e-5)
    drop_frac = 1.0 - kept.mean()
    assert 0.05 < drop_frac < 0.5, f"suspicious dropout rate {drop_frac:.3f}"

    print("KERNEL_OK")
</pallas_src>

<mosaic_0001>
module attributes {stable_mosaic.version = 11 : i64} {
  func.func @_pe_dropout_kernel(%arg0: i32, %arg1: memref<1xi32, #tpu.memory_space<smem>>, %arg2: memref<16x128xf32, #tpu.memory_space<vmem>>, %arg3: memref<16x128xf32, #tpu.memory_space<vmem>>, %arg4: memref<16x128xf32, #tpu.memory_space<vmem>>) attributes {dimension_semantics = [#tpu.dimension_semantics<parallel>], iteration_bounds = array<i64: 1>, scalar_prefetch = 0 : i64, scratch_operands = 0 : i64, tpu.core_type = #tpu.core_type<tc>, window_params = [{transform_indices = @transform_0, window_bounds = array<i64: 1>}, {transform_indices = @transform_1, window_bounds = array<i64: 16, 128>}, {pipeline_mode = #tpu.pipeline_mode<synchronous>, transform_indices = @transform_2, window_bounds = array<i64: 16, 128>}, {transform_indices = @transform_3, window_bounds = array<i64: 16, 128>}]} {
    %c0 = arith.constant 0 : index
    %c0_0 = arith.constant 0 : index
    %0 = vector.load %arg2[%c0, %c0_0] : memref<16x128xf32, #tpu.memory_space<vmem>>, vector<16x128xf32>
    %c0_1 = arith.constant 0 : index
    %c0_2 = arith.constant 0 : index
    %1 = vector.load %arg3[%c0_1, %c0_2] : memref<16x128xf32, #tpu.memory_space<vmem>>, vector<16x128xf32>
    %2 = arith.addf %0, %1 : vector<16x128xf32>
    %c16_i32 = arith.constant 16 : i32
    %3 = arith.muli %arg0, %c16_i32 : i32
    %4 = tpu.iota {dimensions = array<i32: 0>} : vector<16x128xi32>
    %5 = tpu.iota {dimensions = array<i32: 1>} : vector<16x128xi32>
    %6 = vector.broadcast %3 : i32 to vector<16x128xi32>
    %7 = arith.addi %6, %4 : vector<16x128xi32>
    %c128_i32 = arith.constant 128 : i32
    %8 = vector.broadcast %c128_i32 : i32 to vector<16x128xi32>
    %9 = arith.muli %7, %8 : vector<16x128xi32>
    %10 = arith.addi %9, %5 : vector<16x128xi32>
    %c0_3 = arith.constant 0 : index
    %11 = memref.load %arg1[%c0_3] : memref<1xi32, #tpu.memory_space<smem>>
    %c-1640531527_i32 = arith.constant -1640531527 : i32
    %12 = arith.muli %11, %c-1640531527_i32 : i32
    %13 = vector.broadcast %12 : i32 to vector<16x128xi32>
    %14 = arith.addi %10, %13 : vector<16x128xi32>
    %c16_i32_4 = arith.constant 16 : i32
    %15 = vector.broadcast %c16_i32_4 : i32 to vector<16x128xi32>
    %16 = arith.shrui %14, %15 : vector<16x128xi32>
    %17 = arith.xori %14, %16 : vector<16x128xi32>
    %c-2048144789_i32 = arith.constant -2048144789 : i32
    %18 = vector.broadcast %c-2048144789_i32 : i32 to vector<16x128xi32>
    %19 = arith.muli %17, %18 : vector<16x128xi32>
    %c13_i32 = arith.constant 13 : i32
    %20 = vector.broadcast %c13_i32 : i32 to vector<16x128xi32>
    %21 = arith.shrui %19, %20 : vector<16x128xi32>
    %22 = arith.xori %19, %21 : vector<16x128xi32>
    %c-1028477387_i32 = arith.constant -1028477387 : i32
    %23 = vector.broadcast %c-1028477387_i32 : i32 to vector<16x128xi32>
    %24 = arith.muli %22, %23 : vector<16x128xi32>
    %c16_i32_5 = arith.constant 16 : i32
    %25 = vector.broadcast %c16_i32_5 : i32 to vector<16x128xi32>
    %26 = arith.shrui %24, %25 : vector<16x128xi32>
    %27 = arith.xori %24, %26 : vector<16x128xi32>
    %c858993459_i32 = arith.constant 858993459 : i32
    %28 = vector.broadcast %c858993459_i32 : i32 to vector<16x128xi32>
    %29 = arith.cmpi uge, %27, %28 : vector<16x128xi32>
    %cst = arith.constant 1.250000e+00 : f32
    %30 = vector.broadcast %cst : f32 to vector<16x128xf32>
    %31 = arith.mulf %2, %30 : vector<16x128xf32>
    %cst_6 = arith.constant 0.000000e+00 : f32
    %32 = vector.broadcast %cst_6 : f32 to vector<16x128xf32>
    %33 = arith.select %29, %31, %32 : vector<16x128xi1>, vector<16x128xf32>
    %c0_7 = arith.constant 0 : index
    %c0_8 = arith.constant 0 : index
    %34 = vector.load %arg4[%c0_7, %c0_8] : memref<16x128xf32, #tpu.memory_space<vmem>>, vector<16x128xf32>
    tpu.vector_store %arg4[%c0_7, %c0_8], %33 {strides = array<i32>} : memref<16x128xf32, #tpu.memory_space<vmem>>, vector<16x128xf32>,
    return
  }
  func.func @transform_0(%arg0: i32) -> i32 {
    %c0_i32 = arith.constant 0 : i32
    %c0_i32_0 = arith.constant 0 : i32
    return %c0_i32 : i32
  }
  func.func @transform_1(%arg0: i32) -> (i32, i32) {
    %c0_i32 = arith.constant 0 : i32
    %c0_i32_0 = arith.constant 0 : i32
    return %arg0, %c0_i32 : i32, i32
  }
  func.func @transform_2(%arg0: i32) -> (i32, i32) {
    %c0_i32 = arith.constant 0 : i32
    %c0_i32_0 = arith.constant 0 : i32
    %c0_i32_1 = arith.constant 0 : i32
    return %c0_i32, %c0_i32_0 : i32, i32
  }
  func.func @transform_3(%arg0: i32) -> (i32, i32) {
    %c0_i32 = arith.constant 0 : i32
    %c0_i32_0 = arith.constant 0 : i32
    return %arg0, %c0_i32 : i32, i32
  }
}

</mosaic_0001>

<llo_original>
// kernel: tpu_custom_call.1
$region0: #{tpu_custom_call.1}
  #allocation0 [shape = 'u32[]', space=smem, size = 0x4, offset = 0x4, fixed_abs, tag = 'smem constant byte address 0x4 - core index']
  #allocation1 [shape = 'u32[144,128]{1,0:T(1,128)}', space=vmem, size = 0x12000, scoped, tag = 'internal scratch']
  #allocation2 [shape = 's32[1]{0:T(128)S(6)}', space=smem, size = 0x200, scoped, tag = 'scoped memory for tpu_custom_call.1']
  %s0 = inlined_call_operand.<no memory space> [shape: s32[1], index: 0, kind: input, shape index: {}]
  %s1 = inlined_call_operand.hbm [shape: f32[16,128], index: 1, kind: input, shape index: {}]
  %s2 = inlined_call_operand.hbm [shape: f32[16,128], index: 2, kind: input, shape index: {}]
  %s3 = inlined_call_operand.hbm [shape: f32[16,128], index: 3, kind: output, shape index: {}]
  %s4 = sld [smem:[#allocation0]]
  $region30: #{tpu_custom_call.1} parent=0
    _
  %s6 = ssub.s32 1, %s4
  %s7 = scalar_select 0, %s6, %s4
  %8 = sst [smem:[#allocation2]] %s0
  $region1: #{tpu_custom_call.1} parent=0
    #allocation3 [shape = 'u8[8192]{0}', space=vmem, size = 0x2000, scoped, tag = 'input window, operand 1, single buffered']
    #allocation4 [shape = 's32[1]{0}', space=sflag, size = 0x4, scoped, tag = 'scoped memory for tpu_custom_call.1']
    #allocation5 [shape = 's32[1]{0}', space=sflag, size = 0x4, scoped, tag = 'scoped memory for tpu_custom_call.1']
    #allocation6 [shape = 'u8[8192]{0}', space=vmem, size = 0x2000, scoped, tag = 'input window, operand 2, single buffered']
    #allocation7 [shape = 's32[1]{0}', space=sflag, size = 0x4, scoped, tag = 'scoped memory for tpu_custom_call.1']
    #allocation8 [shape = 'u8[8192]{0}', space=vmem, size = 0x2000, scoped, tag = 'output window, operand 0, single buffered']
    %9 = vsyncpa [#allocation4], 0
    %10 = vsyncpa [#allocation7], 0
    %11 = vsyncpa [#allocation5], 0
    // Predicated region
    $region2: #{tpu_custom_call.1} parent=1 // pred_check
      _
    $region3: #{tpu_custom_call.1} parent=1 // pred_check_branch
      %13 = sbr.rel (0) target = $region5
    $region4: #{tpu_custom_call.1} parent=1 // pred_region
      _
    $region5: #{tpu_custom_call.1} parent=1 // pred_fallthru
      _
    // Predicated region
    $region6: #{tpu_custom_call.1} parent=1 // pred_check
      _
    $region7: #{tpu_custom_call.1} parent=1 // pred_check_branch
      %15 = sbr.rel (0) target = $region9
    $region8: #{tpu_custom_call.1} parent=1 // pred_region
      %s17 = ssub.s32 256, 256
      %18 = vsyncadd [#allocation4], %s17
      %s19 = sshll.u32 [#allocation3], 4
      %s20 = int_to_ptr.vmem [resolvable:$true] %s19
      %25 = dma.hbm_to_vmem [thread:$0]  %s1, 256, %s20, [#allocation4], 128, 128, 8
    $region9: #{tpu_custom_call.1} parent=1 // pred_fallthru
      _
    // Predicated region
    $region10: #{tpu_custom_call.1} parent=1 // pred_check
      _
    $region11: #{tpu_custom_call.1} parent=1 // pred_check_branch
      %27 = sbr.rel (0) target = $region13
    $region12: #{tpu_custom_call.1} parent=1 // pred_region
      %s29 = ssub.s32 256, 256
      %30 = vsyncadd [#allocation7], %s29
      %s31 = sshll.u32 [#allocation6], 4
      %s32 = int_to_ptr.vmem [resolvable:$true] %s31
      %37 = dma.hbm_to_vmem [thread:$0]  %s2, 256, %s32, [#allocation7], 128, 128, 8
    $region13: #{tpu_custom_call.1} parent=1 // pred_fallthru
      _
    // Predicated region
    $region14: #{tpu_custom_call.1} parent=1 // pred_check
      _
    $region15: #{tpu_custom_call.1} parent=1 // pred_check_branch
      %39 = sbr.rel (0) target = $region17
    $region16: #{tpu_custom_call.1} parent=1 // pred_region
      %40 = dma.done [#allocation4], 256
    $region17: #{tpu_custom_call.1} parent=1 // pred_fallthru
      _
    // Predicated region
    $region18: #{tpu_custom_call.1} parent=1 // pred_check
      _
    $region19: #{tpu_custom_call.1} parent=1 // pred_check_branch
      %42 = sbr.rel (0) target = $region21
    $region20: #{tpu_custom_call.1} parent=1 // pred_region
      %43 = dma.done [#allocation7], 256
    $region21: #{tpu_custom_call.1} parent=1 // pred_fallthru
      _
    %v44 = vld [vmem:[#allocation3] sm:$0xff]
    %v45 = vld [vmem:[#allocation3 + $0x8] sm:$0xff]
    %v46 = vld [vmem:[#allocation6] sm:$0xff]
    %v47 = vld [vmem:[#allocation6 + $0x8] sm:$0xff]
    %v48 = vadd.f32 %v44, %v46
    %v49 = vadd.f32 %v45, %v47
    %s50 = smul.u32 0, 16
    %v51 = vlaneseq
    %v52 = vshrl.u32 %v51, 7
    %v53 = vadd.s32 %v52, 8
    %v54 = vlaneseq
    %v55 = vand.u32 %v54, 127
    %v56 = vstv %s50
    %v57 = vadd.s32 %v56, %v52
    %v58 = vadd.s32 %v56, %v53
    %v59 = vmul.u32 %v57, 128
    %v60 = vmul.u32 %v58, 128
    %v61 = vadd.s32 %v59, %v55
    %v62 = vadd.s32 %v60, %v55
    %s63 = sld [smem:[#allocation2]]
    %s64 = smul.u32 %s63, 2654435769
    %v65 = vstv %s64
    %v66 = vadd.s32 %v61, %v65
    %v67 = vadd.s32 %v62, %v65
    %v68 = vshrl.u32 %v66, 16
    %v69 = vshrl.u32 %v67, 16
    %v70 = vxor.u32 %v66, %v68
    %v71 = vxor.u32 %v67, %v69
    %v72 = vmul.u32 %v70, 2246822507
    %v73 = vmul.u32 %v71, 2246822507
    %v74 = vshrl.u32 %v72, 13
    %v75 = vshrl.u32 %v73, 13
    %v76 = vxor.u32 %v72, %v74
    %v77 = vxor.u32 %v73, %v75
    %v78 = vmul.u32 %v76, 3266489909
    %v79 = vmul.u32 %v77, 3266489909
    %v80 = vshrl.u32 %v78, 16
    %v81 = vshrl.u32 %v79, 16
    %v82 = vxor.u32 %v78, %v80
    %v83 = vxor.u32 %v79, %v81
    %vm84 = vcmp.ge.u32.totalorder %v82, 858993459
    %vm85 = vcmp.ge.u32.totalorder %v83, 858993459
    %v86 = vmul.f32 %v48, 1.25
    %v87 = vmul.f32 %v49, 1.25
    %v88 = vsel %vm84, %v86, 0.0
    %v89 = vsel %vm85, %v87, 0.0
    %90 = vst [vmem:[#allocation8] sm:$0xff] %v88
    %91 = vst [vmem:[#allocation8 + $0x8] sm:$0xff] %v89
    // Predicated region
    $region22: #{tpu_custom_call.1} parent=1 // pred_check
      _
    $region23: #{tpu_custom_call.1} parent=1 // pred_check_branch
      %93 = sbr.rel (0) target = $region25
    $region24: #{tpu_custom_call.1} parent=1 // pred_region
      %s95 = ssub.s32 256, 256
      %96 = vsyncadd [#allocation5], %s95
      %s97 = sshll.u32 [#allocation8], 4
      %s98 = int_to_ptr.vmem [resolvable:$true] %s97
      %103 = dma.vmem_to_hbm [thread:$0]  %s98, 256, %s3, [#allocation5], 128, 128, 8
    $region25: #{tpu_custom_call.1} parent=1 // pred_fallthru
      _
    // Predicated region
    $region26: #{tpu_custom_call.1} parent=1 // pred_check
      _
    $region27: #{tpu_custom_call.1} parent=1 // pred_check_branch
      %105 = sbr.rel (0) target = $region29
    $region28: #{tpu_custom_call.1} parent=1 // pred_region
      %106 = dma.done [#allocation5], 256
    $region29: #{tpu_custom_call.1} parent=1 // pred_fallthru
      _
    %107 = vsyncpa [#allocation4], 1
    %108 = vsyncpa [#allocation7], 1
    %109 = vsyncpa [#allocation5], 1

</llo_original>
